<compile_context>
chip_gen: v7x
topology: tpu7x:2x2x1
jax: 0.10.0
libtpu: 0.0.40
codegen_flags: <defaults>
</compile_context>

<pallas_src>
import functools

import jax
import jax.numpy as jnp
from jax.experimental import pallas as pl
from jax.experimental.pallas import tpu as pltpu


_SMALL_INPUT_BYTES = 1 << 20   # below this, pallas launch overhead dominates
_MIN_CHUNK_BYTES = 4 << 20     # keep each DMA descriptor >= 4 MiB


def _max_parallel_dmas():
    """Per-generation cap on concurrent DMA descriptors for the copy path."""
    try:
        kind = jax.devices()[0].device_kind.lower()
    except Exception:  # pragma: no cover - defensive
        return 8
    if "v5" in kind:
        return 1   # one stream reaches ~820 GB/s roofline; chunking only adds overhead
    if "v6" in kind:
        return 4   # light chunking only
    return 8       # v7x (and newer/unknown): multiple streams needed for ~3.2 TB/s


def _chunk_bounds(lead, num_chunks):
    """Even split of the leading dim into `num_chunks` (start, size) slices."""
    num_chunks = max(1, min(num_chunks, lead))
    base, rem = divmod(lead, num_chunks)
    bounds, start = [], 0
    for i in range(num_chunks):
        size = base + (1 if i < rem else 0)
        bounds.append((start, size))
        start += size
    return tuple(bounds)


def _make_identity_dma_kernel(bounds):
    """Kernel factory: bounds=None -> single whole-array DMA, else chunked."""

    def kernel(x_hbm, o_hbm, sems):
        if bounds is None:
            cp = pltpu.make_async_copy(x_hbm, o_hbm, sems.at[0])
            cp.start()
            cp.wait()
            return
        copies = []
        for i, (start, size) in enumerate(bounds):  # static Python loop
            cp = pltpu.make_async_copy(
                x_hbm.at[pl.ds(start, size)],
                o_hbm.at[pl.ds(start, size)],
                sems.at[i],
            )
            cp.start()                 # start all descriptors first ...
            copies.append(cp)
        for cp in copies:              # ... then wait on all of them
            cp.wait()

    return kernel


def _pallas_identity_copy(x, num_chunks=1):
    """Materialized bit-exact copy of `x` via HBM->HBM DMA (no VMEM staging)."""
    if x.size == 0:
        return x  # degenerate 0-byte DMA guard
    nbytes = x.size * x.dtype.itemsize
    lead = x.shape[0] if x.ndim >= 1 else 1
    num_chunks = int(max(1, min(num_chunks, lead)))
    bounds = None if num_chunks == 1 else _chunk_bounds(lead, num_chunks)
    n_sems = 1 if bounds is None else len(bounds)

    return pl.pallas_call(
        _make_identity_dma_kernel(bounds),
        out_shape=jax.ShapeDtypeStruct(x.shape, x.dtype),
        in_specs=[pl.BlockSpec(memory_space=pl.ANY)],
        out_specs=pl.BlockSpec(memory_space=pl.ANY),
        scratch_shapes=[pltpu.SemaphoreType.DMA((n_sems,))],
        cost_estimate=pl.CostEstimate(
            flops=0, transcendentals=0, bytes_accessed=2 * nbytes),
    )(x)


def identity_copy(x):
    """Fresh-buffer copy with small-input bypass and size/chip-aware chunking."""
    nbytes = x.size * x.dtype.itemsize
    if x.size == 0 or nbytes < _SMALL_INPUT_BYTES:
        # Launch + DMA-issue latency dominates tiny tensors; identity is exact.
        return x
    num_chunks = min(_max_parallel_dmas(), max(1, nbytes // _MIN_CHUNK_BYTES))
    return _pallas_identity_copy(x, num_chunks=num_chunks)
    # TODO(synk): optionally shard chunk issue across the 2 TCs on v7x via core_map.


class IdentityFirstStage:
    """JAX port of pipeline/ldm/models/autoencoder.py::IdentityFirstStage.

    No parameters; encode/decode/quantize/forward all return x. The identity
    is zero-cost (returns x); `identity_copy` is available when a materialized
    fresh buffer is explicitly needed.
    """

    def __init__(self, *args, vq_interface=False, **kwargs):
        self.vq_interface = vq_interface

    def _identity(self, x):
        return x  # zero HBM passes, zero dispatch — matches nn.Module semantics

    def encode(self, x, *args, **kwargs):
        return self._identity(x)

    def decode(self, x, *args, **kwargs):
        return self._identity(x)

    def quantize(self, x, *args, **kwargs):
        if self.vq_interface:
            return (self._identity(x), None, [None, None, None])
        return self._identity(x)

    def forward(self, x, *args, **kwargs):
        return self._identity(x)

    __call__ = forward


if __name__ == "__main__":
    key = jax.random.PRNGKey(0)
    # NCHW input, small shape consistent with a first-stage feature map.
    x = jax.random.normal(key, (2, 4, 16, 16), dtype=jnp.float32)

    # Module semantics: pure identity (returns x, no kernel, no HBM traffic).
    model = IdentityFirstStage()
    y = jax.block_until_ready(model(x))
    assert y.shape == x.shape and y.dtype == x.dtype
    assert bool(jnp.array_equal(y, x))

    model_vq = IdentityFirstStage(vq_interface=True)
    q, _, _ = model_vq.quantize(x)
    q = jax.block_until_ready(q)
    e = jax.block_until_ready(model.encode(x))
    d = jax.block_until_ready(model.decode(x))
    assert bool(jnp.array_equal(q, x))
    assert bool(jnp.array_equal(e, x))
    assert bool(jnp.array_equal(d, x))

    # Exercise the Pallas materialized-copy kernel once (under jit, as the
    # perf review recommends): both the single-descriptor and the chunked
    # (2 parallel DMAs along the leading dim) paths.
    copy_single = jax.jit(functools.partial(_pallas_identity_copy, num_chunks=1))
    copy_chunked = jax.jit(functools.partial(_pallas_identity_copy, num_chunks=2))
    c1 = jax.block_until_ready(copy_single(x))
    c2 = jax.block_until_ready(copy_chunked(x))
    assert bool(jnp.array_equal(c1, x))
    assert bool(jnp.array_equal(c2, x))

    # Size-aware helper (hits the small-input fast path for this 8 KiB tensor).
    c3 = jax.block_until_ready(identity_copy(x))
    assert bool(jnp.array_equal(c3, x))

    print("KERNEL_OK")
</pallas_src>

<mosaic_0001>
module attributes {stable_mosaic.version = 11 : i64} {
  func.func @kernel(%arg0: memref<2x4x16x16xf32, #tpu.memory_space<any>>, %arg1: memref<2x4x16x16xf32, #tpu.memory_space<any>>, %arg2: memref<1x!tpu.dma_semaphore, #tpu.memory_space<semaphore_mem>>) attributes {dimension_semantics = [], scalar_prefetch = 0 : i64, scratch_operands = 1 : i64, tpu.core_type = #tpu.core_type<tc>} {
    %c0_i32 = arith.constant 0 : i32
    %0 = tpu.memref_slice %arg2[%c0_i32] : memref<1x!tpu.dma_semaphore, #tpu.memory_space<semaphore_mem>> -> memref<1x!tpu.dma_semaphore, #tpu.memory_space<semaphore_mem>>
    %1 = tpu.memref_squeeze %0 : memref<1x!tpu.dma_semaphore, #tpu.memory_space<semaphore_mem>> -> memref<!tpu.dma_semaphore, #tpu.memory_space<semaphore_mem>>
    tpu.enqueue_dma source(%arg0 : memref<2x4x16x16xf32, #tpu.memory_space<any>>) target(%arg1 : memref<2x4x16x16xf32, #tpu.memory_space<any>>) target_semaphore(%1 : memref<!tpu.dma_semaphore, #tpu.memory_space<semaphore_mem>>)
    %c0_i32_0 = arith.constant 0 : i32
    %2 = tpu.memref_slice %arg2[%c0_i32_0] : memref<1x!tpu.dma_semaphore, #tpu.memory_space<semaphore_mem>> -> memref<1x!tpu.dma_semaphore, #tpu.memory_space<semaphore_mem>>
    %3 = tpu.memref_squeeze %2 : memref<1x!tpu.dma_semaphore, #tpu.memory_space<semaphore_mem>> -> memref<!tpu.dma_semaphore, #tpu.memory_space<semaphore_mem>>
    tpu.wait_dma2 semaphore(%3 : memref<!tpu.dma_semaphore, #tpu.memory_space<semaphore_mem>>) src(%arg0 : memref<2x4x16x16xf32, #tpu.memory_space<any>>) dst(%arg1 : memref<2x4x16x16xf32, #tpu.memory_space<any>>)
    return
  }
}

</mosaic_0001>

<llo_original>
// kernel: _pallas_identity_copy.1
$region0: #{_pallas_identity_copy.1}
  #allocation0 [shape = 'u32[]', space=smem, size = 0x4, offset = 0x4, fixed_abs, tag = 'smem constant byte address 0x4 - core index']
  #allocation1 [shape = 'u32[144,128]{1,0:T(1,128)}', space=vmem, size = 0x12000, scoped, tag = 'internal scratch']
  #allocation2 [shape = 's32[1]{0}', space=sflag, size = 0x4, scoped, tag = 'scratch operand']
  #allocation3 [shape = 's32[]', space=sflag, size = 0x4, offset = 0, fixed_abs, tag = 'sflag constant byte address 0x0 - dummy sync flag']
  #allocation4 [shape = 'u32[0]{0}', space=smem, size = 0, offset = 0, fixed_abs, tag = 'smem constant byte address 0x0 - null']
  %s0 = inlined_call_operand.hbm [shape: f32[2,4,16,16], index: 0, kind: input, shape index: {}]
  %s1 = inlined_call_operand.hbm [shape: f32[2,4,16,16], index: 1, kind: output, shape index: {}]
  %s2 = sld [smem:[#allocation0]]
  $region2: #{_pallas_identity_copy.1} parent=0
    _
  %s4 = ssub.s32 1, %s2
  %s5 = scalar_select 0, %s4, %s2
  %s7 = sshll.u32 1, 14
  %s8 = sxor.u32 4294967295, %s7
  %s11 = sshll.u32 3, 24
  %s12 = sxor.u32 4294967295, %s11
  %s13 = sand.u32 0, %s12
  %s15 = sor.u32 %s13, 0
  %18 = dma.general %s0, 2048, %s1, [#allocation2], [#allocation3], [#allocation4], %s15, 0
  %s19 = smul.u32 2, 4
  %s20 = smul.u32 %s19, 16
  %s21 = smul.u32 %s20, 1
  %s22 = sshll.u32 %s21, 4
  %23 = dma.done [#allocation2], %s22
  %24 = vsyncmov [#allocation2]
  %s25 = vpop.sfrf %24
  %p26 = scmp.eq.s32.totalorder %s25, 0
  %p27 = pneg %p26
  %29 = shalt.err (%p27)

</llo_original>
